<compile_context>
chip_gen: v6e
topology: v6e:2x2x1
jax: 0.10.0
libtpu: 0.0.40
codegen_flags: <defaults>
</compile_context>

<pallas_src>
import math

import jax
import jax.numpy as jnp
from jax import lax
from jax.experimental import pallas as pl
from jax.experimental.pallas import tpu as pltpu


def _round_up(x: int, m: int) -> int:
    return ((x + m - 1) // m) * m


def _matmul_kernel(x_ref, w_ref, o_ref):
    # x_ref: (tm, Dk)   w_ref: (Dk, Nk)   o_ref: (tm, Nk)
    o_ref[...] = jnp.dot(
        x_ref[...], w_ref[...], preferred_element_type=jnp.float32
    ).astype(o_ref.dtype)


def reconstruction_head_forward(X, W, *, tm: int = 1024, use_pallas=None):
    """Linear(d_embedding -> patch_size, bias=False) over X's last axis.

    X: (..., d_embedding) float32
    W: (patch_size, d_embedding) float32  (torch.nn.Linear weight layout)
    Returns: (..., patch_size)
    """
    D = X.shape[-1]
    P_out, D_w = W.shape
    assert D_w == D, "weight in_features must match X's last dim"

    lead = X.shape[:-1]
    M = math.prod(lead) if lead else 1

    # For tiny problems the pallas_call fixed overhead exceeds the cost of a
    # single fused XLA matmul; default to plain XLA there.
    if use_pallas is None:
        use_pallas = M * D >= (1 << 18)
    if not use_pallas or M == 0:
        return jnp.einsum("...d,pd->...p", X, W,
                          precision=lax.Precision.HIGHEST)

    Wt = W.T  # (D, P_out)

    # ---- Output row packing (lane-dense stores without traffic inflation) --
    k = 1
    if 0 < P_out < 128 and 128 % P_out == 0:
        kk = 128 // P_out
        # Only pack when M reshapes cleanly and the block-diagonal weight
        # stays small enough to hold (double-buffered) in VMEM.
        if M % kk == 0 and 2 * (kk * D) * (kk * P_out) * 4 <= 8 * 1024 * 1024:
            k = kk

    if k > 1:
        Mk = M // k
        x_in = X.reshape(Mk, k * D)                       # free row-major view
        eye = jnp.eye(k, dtype=Wt.dtype)
        # Block-diagonal weight: W.T replicated k times on the diagonal.
        # (Cheap; under jit of the full model this is constant-folded.)
        w_in = jnp.einsum("ij,dp->idjp", eye, Wt).reshape(k * D, k * P_out)
    else:
        Mk = M
        x_in = X.reshape(M, D)
        w_in = Wt

    Dk = x_in.shape[1]   # contraction dim seen by the kernel
    Nk = w_in.shape[1]   # output width seen by the kernel

    # ---- Row-tile selection within an explicit VMEM budget -----------------
    # Budget chosen to fit v7x (64 MiB physical VMEM) with headroom; v5e/v6e
    # have 128 MiB physical so the same budget is safe everywhere.
    vmem_budget = 36 * 1024 * 1024
    weight_bytes = 2 * Dk * Nk * 4            # weight (count double-buffered)
    row_bytes = 2 * (Dk + Nk) * 4             # dbl-buffered X row + out row
    tm_cap = max(8, (vmem_budget - weight_bytes) // row_bytes)
    tm = max(8, min(tm, tm_cap))
    tm = (tm // 8) * 8                        # sublane multiple

    # Don't over-allocate for small inputs; keep >= 2 grid steps when there is
    # enough work so the "parallel" axis shards across both v7x TensorCores.
    tm = min(tm, _round_up(Mk, 8))
    if Mk > 8:
        tm = min(tm, _round_up(pl.cdiv(Mk, 2), 8))

    grid = (pl.cdiv(Mk, tm),)                 # ragged edge block is masked

    vmem_needed = 2 * tm * (Dk + Nk) * 4 + weight_bytes
    vmem_limit = int(min(max(vmem_needed * 5 // 4, 32 * 1024 * 1024),
                         56 * 1024 * 1024))

    out2d = pl.pallas_call(
        _matmul_kernel,
        out_shape=jax.ShapeDtypeStruct((Mk, Nk), X.dtype),
        grid=grid,
        in_specs=[
            pl.BlockSpec((tm, Dk), lambda i: (i, 0)),   # row tile of X
            pl.BlockSpec((Dk, Nk), lambda i: (0, 0)),   # weight, grid-resident
        ],
        out_specs=pl.BlockSpec((tm, Nk), lambda i: (i, 0)),
        compiler_params=pltpu.CompilerParams(
            dimension_semantics=("parallel",),
            vmem_limit_bytes=vmem_limit,
        ),
    )(x_in, w_in)

    # (Mk, k*P_out) has the same row-major layout as (M, P_out): free reshape.
    return out2d.reshape(*lead, P_out)


if __name__ == "__main__":
    # Small shapes consistent with the module's usage:
    B = 2      # batch
    Mmod = 4   # n_modalities
    Np = 8     # n_patches
    D = 32     # d_embedding
    P = 16     # patch_size

    key = jax.random.PRNGKey(0)
    kx, kw = jax.random.split(key, 2)

    X = jax.random.normal(kx, (B, Mmod, Np, D), dtype=jnp.float32)

    # torch.nn.Linear default init: U(-1/sqrt(fan_in), 1/sqrt(fan_in)).
    bound = 1.0 / (D ** 0.5)
    W = jax.random.uniform(kw, (P, D), minval=-bound, maxval=bound,
                           dtype=jnp.float32)

    # Force the Pallas path (the size gate would otherwise pick plain XLA at
    # these tiny demo shapes).  This exercises the packed, lane-dense path.
    out = reconstruction_head_forward(X, W, use_pallas=True)
    out = jax.block_until_ready(out)

    ref = jnp.einsum("bmnd,pd->bmnp", X, W)
    assert out.shape == (B, Mmod, Np, P), out.shape
    assert jnp.allclose(out, ref, atol=1e-5, rtol=1e-5)

    # Also exercise the fallback path (no packing, true-width output, ragged
    # edge block): M not divisible by 128 / patch_size.
    X2 = jax.random.normal(kx, (7, D), dtype=jnp.float32)
    out2 = jax.block_until_ready(
        reconstruction_head_forward(X2, W, use_pallas=True))
    ref2 = X2 @ W.T
    assert out2.shape == (7, P), out2.shape
    assert jnp.allclose(out2, ref2, atol=1e-5, rtol=1e-5)

    print("KERNEL_OK")
</pallas_src>

<mosaic_0001>
module attributes {stable_mosaic.version = 11 : i64} {
  func.func @_matmul_kernel(%arg0: i32, %arg1: memref<8x256xf32, #tpu.memory_space<vmem>>, %arg2: memref<256x128xf32, #tpu.memory_space<vmem>>, %arg3: memref<8x128xf32, #tpu.memory_space<vmem>>) attributes {dimension_semantics = [#tpu.dimension_semantics<parallel>], iteration_bounds = array<i64: 1>, scalar_prefetch = 0 : i64, scratch_operands = 0 : i64, tpu.core_type = #tpu.core_type<tc>, window_params = [{transform_indices = @transform_0, window_bounds = array<i64: 8, 256>}, {pipeline_mode = #tpu.pipeline_mode<synchronous>, transform_indices = @transform_1, window_bounds = array<i64: 256, 128>}, {transform_indices = @transform_2, window_bounds = array<i64: 8, 128>}]} {
    %c0 = arith.constant 0 : index
    %c0_0 = arith.constant 0 : index
    %0 = vector.load %arg1[%c0, %c0_0] : memref<8x256xf32, #tpu.memory_space<vmem>>, vector<8x256xf32>
    %c0_1 = arith.constant 0 : index
    %c0_2 = arith.constant 0 : index
    %1 = vector.load %arg2[%c0_1, %c0_2] : memref<256x128xf32, #tpu.memory_space<vmem>>, vector<256x128xf32>
    %cst = arith.constant dense<0.000000e+00> : vector<8x128xf32>
    %2 = tpu.matmul %0, %1, %cst {dimension_numbers = #tpu.dot_dimension_numbers<[1], [0], [0], [1], [0, 0, 1, 1], [], []>} : vector<8x256xf32>, vector<256x128xf32>, vector<8x128xf32> -> vector<8x128xf32>
    %c0_3 = arith.constant 0 : index
    %c0_4 = arith.constant 0 : index
    %3 = vector.load %arg3[%c0_3, %c0_4] : memref<8x128xf32, #tpu.memory_space<vmem>>, vector<8x128xf32>
    tpu.vector_store %arg3[%c0_3, %c0_4], %2 {strides = array<i32>} : memref<8x128xf32, #tpu.memory_space<vmem>>, vector<8x128xf32>,
    return
  }
  func.func @transform_0(%arg0: i32) -> (i32, i32) {
    %c0_i32 = arith.constant 0 : i32
    %c0_i32_0 = arith.constant 0 : i32
    return %arg0, %c0_i32 : i32, i32
  }
  func.func @transform_1(%arg0: i32) -> (i32, i32) {
    %c0_i32 = arith.constant 0 : i32
    %c0_i32_0 = arith.constant 0 : i32
    %c0_i32_1 = arith.constant 0 : i32
    return %c0_i32, %c0_i32_0 : i32, i32
  }
  func.func @transform_2(%arg0: i32) -> (i32, i32) {
    %c0_i32 = arith.constant 0 : i32
    %c0_i32_0 = arith.constant 0 : i32
    return %arg0, %c0_i32 : i32, i32
  }
}

</mosaic_0001>

<llo_original>
// kernel: tpu_custom_call.1
$region0: #{tpu_custom_call.1}
  #allocation0 [shape = 'u32[]', space=smem, size = 0x4, offset = 0x4, fixed_abs, tag = 'smem constant byte address 0x4 - core index']
  #allocation1 [shape = 'u32[144,128]{1,0:T(1,128)}', space=vmem, size = 0x12000, scoped, tag = 'internal scratch']
  %s0 = inlined_call_operand.hbm [shape: f32[8,256], index: 0, kind: input, shape index: {}]
  %s1 = inlined_call_operand.hbm [shape: f32[256,128], index: 1, kind: input, shape index: {}]
  %s2 = inlined_call_operand.hbm [shape: f32[8,128], index: 2, kind: output, shape index: {}]
  %s3 = sld [smem:[#allocation0]]
  $region26: #{tpu_custom_call.1} parent=0
    _
  %s5 = ssub.s32 1, %s3
  %s6 = scalar_select 0, %s5, %s3
  $region1: #{tpu_custom_call.1} parent=0
    #allocation2 [shape = 'u8[8192]{0}', space=vmem, size = 0x2000, scoped, tag = 'input window, operand 0, single buffered']
    #allocation3 [shape = 's32[1]{0}', space=sflag, size = 0x4, scoped, tag = 'scoped memory for tpu_custom_call.1']
    #allocation4 [shape = 's32[1]{0}', space=sflag, size = 0x4, scoped, tag = 'scoped memory for tpu_custom_call.1']
    #allocation5 [shape = 'u8[131072]{0}', space=vmem, size = 0x20000, scoped, tag = 'input window, operand 1, single buffered']
    #allocation6 [shape = 's32[1]{0}', space=sflag, size = 0x4, scoped, tag = 'scoped memory for tpu_custom_call.1']
    #allocation7 [shape = 'u8[4096]{0}', space=vmem, size = 0x1000, scoped, tag = 'output window, operand 0, single buffered']
    %7 = vsyncpa [#allocation3], 0
    %8 = vsyncpa [#allocation6], 0
    %9 = vsyncpa [#allocation4], 0
    // Predicated region
    $region2: #{tpu_custom_call.1} parent=1 // pred_check
      _
    $region3: #{tpu_custom_call.1} parent=1 // pred_check_branch
      %11 = sbr.rel (0) target = $region5
    $region4: #{tpu_custom_call.1} parent=1 // pred_region
      %s13 = ssub.s32 256, 256
      %14 = vsyncadd [#allocation3], %s13
      %s16 = sshll.u32 [#allocation2], 4
      %s17 = int_to_ptr.vmem [resolvable:$true] %s16
      %19 = dma.hbm_to_vmem [thread:$0]  %s0, 256, %s17, [#allocation3]
    $region5: #{tpu_custom_call.1} parent=1 // pred_fallthru
      _
    // Predicated region
    $region6: #{tpu_custom_call.1} parent=1 // pred_check
      _
    $region7: #{tpu_custom_call.1} parent=1 // pred_check_branch
      %21 = sbr.rel (0) target = $region9
    $region8: #{tpu_custom_call.1} parent=1 // pred_region
      %s23 = ssub.s32 4096, 4096
      %24 = vsyncadd [#allocation6], %s23
      %s25 = sshll.u32 [#allocation5], 4
      %s26 = int_to_ptr.vmem [resolvable:$true] %s25
      %31 = dma.hbm_to_vmem [thread:$0]  %s1, 4096, %s26, [#allocation6], 128, 128, 8
    $region9: #{tpu_custom_call.1} parent=1 // pred_fallthru
      _
    // Predicated region
    $region10: #{tpu_custom_call.1} parent=1 // pred_check
      _
    $region11: #{tpu_custom_call.1} parent=1 // pred_check_branch
      %33 = sbr.rel (0) target = $region13
    $region12: #{tpu_custom_call.1} parent=1 // pred_region
      %34 = dma.done [#allocation3], 256
    $region13: #{tpu_custom_call.1} parent=1 // pred_fallthru
      _
    // Predicated region
    $region14: #{tpu_custom_call.1} parent=1 // pred_check
      _
    $region15: #{tpu_custom_call.1} parent=1 // pred_check_branch
      %36 = sbr.rel (0) target = $region17
    $region16: #{tpu_custom_call.1} parent=1 // pred_region
      %37 = dma.done [#allocation6], 4096
    $region17: #{tpu_custom_call.1} parent=1 // pred_fallthru
      _
    %v38 = vld [vmem:[#allocation2] sm:$0xff]
    %v39 = vld [vmem:[#allocation2 + $0x8] sm:$0xff]
    %v40 = vld [vmem:[#allocation5] sm:$0xff]
    %v41 = vld [vmem:[#allocation5 + $0x8] sm:$0xff]
    %v42 = vld [vmem:[#allocation5 + $0x10] sm:$0xff]
    %v43 = vld [vmem:[#allocation5 + $0x18] sm:$0xff]
    %v44 = vld [vmem:[#allocation5 + $0x20] sm:$0xff]
    %v45 = vld [vmem:[#allocation5 + $0x28] sm:$0xff]
    %v46 = vld [vmem:[#allocation5 + $0x30] sm:$0xff]
    %v47 = vld [vmem:[#allocation5 + $0x38] sm:$0xff]
    %v48 = vld [vmem:[#allocation5 + $0x40] sm:$0xff]
    %v49 = vld [vmem:[#allocation5 + $0x48] sm:$0xff]
    %v50 = vld [vmem:[#allocation5 + $0x50] sm:$0xff]
    %v51 = vld [vmem:[#allocation5 + $0x58] sm:$0xff]
    %v52 = vld [vmem:[#allocation5 + $0x60] sm:$0xff]
    %v53 = vld [vmem:[#allocation5 + $0x68] sm:$0xff]
    %v54 = vld [vmem:[#allocation5 + $0x70] sm:$0xff]
    %v55 = vld [vmem:[#allocation5 + $0x78] sm:$0xff]
    %v56 = vld [vmem:[#allocation5 + $0x80] sm:$0xff]
    %v57 = vld [vmem:[#allocation5 + $0x88] sm:$0xff]
    %v58 = vld [vmem:[#allocation5 + $0x90] sm:$0xff]
    %v59 = vld [vmem:[#allocation5 + $0x98] sm:$0xff]
    %v60 = vld [vmem:[#allocation5 + $0xa0] sm:$0xff]
    %v61 = vld [vmem:[#allocation5 + $0xa8] sm:$0xff]
    %v62 = vld [vmem:[#allocation5 + $0xb0] sm:$0xff]
    %v63 = vld [vmem:[#allocation5 + $0xb8] sm:$0xff]
    %v64 = vld [vmem:[#allocation5 + $0xc0] sm:$0xff]
    %v65 = vld [vmem:[#allocation5 + $0xc8] sm:$0xff]
    %v66 = vld [vmem:[#allocation5 + $0xd0] sm:$0xff]
    %v67 = vld [vmem:[#allocation5 + $0xd8] sm:$0xff]
    %v68 = vld [vmem:[#allocation5 + $0xe0] sm:$0xff]
    %v69 = vld [vmem:[#allocation5 + $0xe8] sm:$0xff]
    %v70 = vld [vmem:[#allocation5 + $0xf0] sm:$0xff]
    %v71 = vld [vmem:[#allocation5 + $0xf8] sm:$0xff]
    %72 = vmatprep.subr.mxu0 0.0
    %73 = vmatpush1.msra.mxu0 %v55
    %74 = vmatprep.subr.mxu0 0.0
    %75 = vmatpush1.msra.mxu0 %v54
    %76 = vmatprep.subr.mxu0 0.0
    %77 = vmatpush1.msra.mxu0 %v53
    %78 = vmatprep.subr.mxu0 0.0
    %79 = vmatpush1.msra.mxu0 %v52
    %80 = vmatprep.subr.mxu0 0.0
    %81 = vmatpush1.msra.mxu0 %v51
    %82 = vmatprep.subr.mxu0 0.0
    %83 = vmatpush1.msra.mxu0 %v50
    %84 = vmatprep.subr.mxu0 0.0
    %85 = vmatpush1.msra.mxu0 %v49
    %86 = vmatprep.subr.mxu0 0.0
    %87 = vmatpush1.msra.mxu0 %v48
    %88 = vmatprep.subr.mxu0 0.0
    %89 = vmatpush1.msra.mxu0 %v47
    %90 = vmatprep.subr.mxu0 0.0
    %91 = vmatpush1.msra.mxu0 %v46
    %92 = vmatprep.subr.mxu0 0.0
    %93 = vmatpush1.msra.mxu0 %v45
    %94 = vmatprep.subr.mxu0 0.0
    %95 = vmatpush1.msra.mxu0 %v44
    %96 = vmatprep.subr.mxu0 0.0
    %97 = vmatpush1.msra.mxu0 %v43
    %98 = vmatprep.subr.mxu0 0.0
    %99 = vmatpush1.msra.mxu0 %v42
    %100 = vmatprep.subr.mxu0 0.0
    %101 = vmatpush1.msra.mxu0 %v41
    %102 = vmatprep.subr.mxu0 0.0
    %103 = vmatpush1.msra.mxu0 %v40
    %104 = vmatprep.subr.mxu0 0.0
    %105 = vmatpush2.msra.mxu0 %v71
    %106 = vmatprep.subr.mxu0 0.0
    %107 = vmatpush2.msra.mxu0 %v70
    %108 = vmatprep.subr.mxu0 0.0
    %109 = vmatpush2.msra.mxu0 %v69
    %110 = vmatprep.subr.mxu0 0.0
    %111 = vmatpush2.msra.mxu0 %v68
    %112 = vmatprep.subr.mxu0 0.0
    %113 = vmatpush2.msra.mxu0 %v67
    %114 = vmatprep.subr.mxu0 0.0
    %115 = vmatpush2.msra.mxu0 %v66
    %116 = vmatprep.subr.mxu0 0.0
    %117 = vmatpush2.msra.mxu0 %v65
    %118 = vmatprep.subr.mxu0 0.0
    %119 = vmatpush2.msra.mxu0 %v64
    %120 = vmatprep.subr.mxu0 0.0
    %121 = vmatpush2.msra.mxu0 %v63
    %122 = vmatprep.subr.mxu0 0.0
    %123 = vmatpush2.msra.mxu0 %v62
    %124 = vmatprep.subr.mxu0 0.0
    %125 = vmatpush2.msra.mxu0 %v61
    %126 = vmatprep.subr.mxu0 0.0
    %127 = vmatpush2.msra.mxu0 %v60
    %128 = vmatprep.subr.mxu0 0.0
    %129 = vmatpush2.msra.mxu0 %v59
    %130 = vmatprep.subr.mxu0 0.0
    %131 = vmatpush2.msra.mxu0 %v58
    %132 = vmatprep.subr.mxu0 0.0
    %133 = vmatpush2.msra.mxu0 %v57
    %134 = vmatprep.subr.mxu0 0.0
    %135 = vmatpush2.msra.mxu0 %v56
    %136 = vmatprep.mubr.f32.mxu0 %v39
    %137 = vmatmul.mubr.f32.gmra.mxu0 %v38
    %v138 = vpop.f32.mrf.mxu0
    %v139 = vadd.f32 0.0, %v138
    %v140 = vpop.f32.mrf.mxu0
    %141 = vdwg.mxu0
    %142 = vst [vmem:[#allocation7] sm:$0xff] %v139
    // Predicated region
    $region18: #{tpu_custom_call.1} parent=1 // pred_check
      _
    $region19: #{tpu_custom_call.1} parent=1 // pred_check_branch
      %144 = sbr.rel (0) target = $region21
    $region20: #{tpu_custom_call.1} parent=1 // pred_region
      %s146 = ssub.s32 128, 128
      %147 = vsyncadd [#allocation4], %s146
      %s149 = sshll.u32 [#allocation7], 4
      %s150 = int_to_ptr.vmem [resolvable:$true] %s149
      %152 = dma.vmem_to_hbm [thread:$0]  %s150, 128, %s2, [#allocation4]
    $region21: #{tpu_custom_call.1} parent=1 // pred_fallthru
      _
    // Predicated region
    $region22: #{tpu_custom_call.1} parent=1 // pred_check
      _
    $region23: #{tpu_custom_call.1} parent=1 // pred_check_branch
      %154 = sbr.rel (0) target = $region25
    $region24: #{tpu_custom_call.1} parent=1 // pred_region
      %155 = dma.done [#allocation4], 128
    $region25: #{tpu_custom_call.1} parent=1 // pred_fallthru
      _
    %156 = vsyncpa [#allocation3], 1
    %157 = vsyncpa [#allocation6], 1
    %158 = vsyncpa [#allocation4], 1

</llo_original>
